<compile_context>
chip_gen: v5e
topology: v5e:2x2
jax: 0.10.0
libtpu: 0.0.40
codegen_flags: <defaults>
</compile_context>

<pallas_src>
import functools

import jax
import jax.numpy as jnp
import numpy as np
from jax.experimental import pallas as pl
from jax.experimental.pallas import tpu as pltpu

NEG_SLOPE = 0.01   # PyTorch nn.LeakyReLU default negative_slope
LANE = 128         # TPU lane width; output last dims are padded up to this


def _vmem():
    return pl.BlockSpec(memory_space=pltpu.MemorySpace.VMEM)


def _smem():
    return pl.BlockSpec(memory_space=pltpu.MemorySpace.SMEM)


# ------------------------------ in-kernel math ------------------------------------------
def _mlp_logits(x, w1_ref, b1_ref, w2_ref, b2_ref, w3_ref, b3_ref):
    """Flatten -> Linear -> LeakyReLU -> (Dropout=id) -> Linear -> LeakyReLU -> (Dropout=id) -> Linear.
    Matmuls feed the MXU in bf16 (weights pre-cast in the wrapper); accumulation, bias adds
    and LeakyReLU stay in f32."""
    h = jnp.dot(x.astype(jnp.bfloat16), w1_ref[...],
                preferred_element_type=jnp.float32) + b1_ref[...]
    h = jnp.where(h > 0, h, NEG_SLOPE * h)
    h = jnp.dot(h.astype(jnp.bfloat16), w2_ref[...],
                preferred_element_type=jnp.float32) + b2_ref[...]
    h = jnp.where(h > 0, h, NEG_SLOPE * h)
    out = jnp.dot(h.astype(jnp.bfloat16), w3_ref[...],
                  preferred_element_type=jnp.float32) + b3_ref[...]
    return out                                             # (B, nc_pad) f32


def _conv_pooled(xc_ref, wstack_ref, cb_ref, *, batch, length):
    """Conv1d(32 -> 1, k=3, stride=1, pad=1) + squeeze(1), as MXU matmuls.

    xc_ref:     (B*L, C)        rows = (batch, position), channels on the lane axis.
    wstack_ref: (3, C, LANE)    per-tap weights; only lane 0 of each (C, LANE) slab is live.
    cb_ref:     (1,) in SMEM    conv bias scalar.
    Returns (B*L, LANE) f32; lane 0 holds the conv output.
    """
    M, _ = xc_ref.shape
    x = xc_ref[...].astype(jnp.float32)

    # Per-tap channel contraction on the MXU.
    t0 = jnp.dot(x, wstack_ref[0], preferred_element_type=jnp.float32)   # tap l-1
    t1 = jnp.dot(x, wstack_ref[1], preferred_element_type=jnp.float32)   # tap l
    t2 = jnp.dot(x, wstack_ref[2], preferred_element_type=jnp.float32)   # tap l+1

    # Shift t0 down / t2 up by one row (one position along L) using banded shift matrices
    # built from 2-D iota. All-zero rows reproduce Conv1d's zero padding at l=0 / l=L-1 and
    # keep the shift from leaking across batch boundaries (B is tiny for this head, so a
    # few static equality terms suffice).
    i = jax.lax.broadcasted_iota(jnp.int32, (M, M), 0)
    j = jax.lax.broadcasted_iota(jnp.int32, (M, M), 1)
    down = i == j + 1            # row m picks row m-1
    up = i == j - 1              # row m picks row m+1
    for b in range(1, batch):
        down = jnp.logical_and(down, i != b * length)
        up = jnp.logical_and(up, i != b * length - 1)
    s_down = jnp.where(down, 1.0, 0.0)
    s_up = jnp.where(up, 1.0, 0.0)

    y = (jnp.dot(s_down, t0, preferred_element_type=jnp.float32)
         + t1
         + jnp.dot(s_up, t2, preferred_element_type=jnp.float32))
    return y + cb_ref[0]                                   # scalar bias from SMEM


# ------------------------------ kernels --------------------------------------------------
def _mlp_kernel(cls_ref, w1_ref, b1_ref, w2_ref, b2_ref, w3_ref, b3_ref, logits_ref):
    logits_ref[...] = _mlp_logits(
        cls_ref[...].astype(jnp.float32),
        w1_ref, b1_ref, w2_ref, b2_ref, w3_ref, b3_ref).astype(logits_ref.dtype)


def _fused_kernel(xc_ref, wstack_ref, cb_ref,
                  cls_ref, w1_ref, b1_ref, w2_ref, b2_ref, w3_ref, b3_ref,
                  pooled_ref, logits_ref, *, batch, length):
    pooled_ref[...] = _conv_pooled(
        xc_ref, wstack_ref, cb_ref, batch=batch, length=length).astype(pooled_ref.dtype)
    logits_ref[...] = _mlp_logits(
        cls_ref[...].astype(jnp.float32),
        w1_ref, b1_ref, w2_ref, b2_ref, w3_ref, b3_ref).astype(logits_ref.dtype)


# ------------------------------ wrappers --------------------------------------------------
def _prep_head_params(head_params, num_classes):
    """bf16 weights for the MXU, f32 biases, final layer zero-padded to a lane-dense width."""
    w1, b1, w2, b2, w3, b3 = head_params
    nc_pad = LANE * pl.cdiv(num_classes, LANE)
    w3p = jnp.zeros((w3.shape[0], nc_pad), jnp.float32).at[:, :num_classes].set(w3)
    b3p = jnp.zeros((1, nc_pad), jnp.float32).at[:, :num_classes].set(b3.reshape(1, -1))
    params = (w1.astype(jnp.bfloat16), b1.reshape(1, -1).astype(jnp.float32),
              w2.astype(jnp.bfloat16), b2.reshape(1, -1).astype(jnp.float32),
              w3p.astype(jnp.bfloat16), b3p)
    return params, nc_pad


def cls_head_forward(cls_token, head_params):
    """ClassificationHead: Flatten -> Linear(D,150) -> LeakyReLU -> Dropout -> Linear(150,50)
    -> LeakyReLU -> Dropout -> Linear(50,num_classes).  Dropout = identity (eval)."""
    B = cls_token.shape[0]
    x = cls_token.reshape(B, -1).astype(jnp.float32)       # nn.Flatten
    num_classes = head_params[4].shape[1]
    params, nc_pad = _prep_head_params(head_params, num_classes)

    logits_pad = pl.pallas_call(
        _mlp_kernel,
        out_shape=jax.ShapeDtypeStruct((B, nc_pad), jnp.float32),
        in_specs=[_vmem()] * 7,
        out_specs=_vmem(),
    )(x, *params)
    return logits_pad[:, :num_classes].astype(cls_token.dtype)


def convnext_cls_head_forward(cls_token, head_params, image_embeds=None,
                              conv_params=None, compute_pooled=False):
    """Matches ConvNeXtClsHead.forward: returns self.cls_head(cls_token).

    pooled_features = conv1d(image_embeds).squeeze(1) is computed-then-discarded in the
    reference forward (dead code), so it is skipped by default.  With compute_pooled=True
    it is fused into the same single kernel and returned as a second value.
    """
    if not compute_pooled:
        return cls_head_forward(cls_token, head_params)

    conv_w, conv_b = conv_params
    B, C, L = image_embeds.shape
    num_classes = head_params[4].shape[1]
    params, nc_pad = _prep_head_params(head_params, num_classes)

    # Channels on the lane axis; rows are (batch, position).  Layout plumbing only.
    x2d = jnp.transpose(image_embeds, (0, 2, 1)).reshape(B * L, C).astype(jnp.float32)
    # Per-tap conv weights, each padded to a lane-dense (C, LANE) slab (lane 0 live).
    wstack = jnp.zeros((3, C, LANE), jnp.float32).at[:, :, 0].set(
        jnp.transpose(conv_w[0], (1, 0)).astype(jnp.float32))
    cb = conv_b.reshape(1).astype(jnp.float32)              # scalar bias -> SMEM

    x_cls = cls_token.reshape(B, -1).astype(jnp.float32)

    kernel = functools.partial(_fused_kernel, batch=B, length=L)
    pooled_pad, logits_pad = pl.pallas_call(
        kernel,
        out_shape=(jax.ShapeDtypeStruct((B * L, LANE), jnp.float32),
                   jax.ShapeDtypeStruct((B, nc_pad), jnp.float32)),
        in_specs=[_vmem(), _vmem(), _smem()] + [_vmem()] * 7,
        out_specs=(_vmem(), _vmem()),
    )(x2d, wstack, cb, x_cls, *params)

    pooled = pooled_pad[:, 0].reshape(B, L).astype(image_embeds.dtype)
    logits = logits_pad[:, :num_classes].astype(cls_token.dtype)
    return logits, pooled


# ------------------------------ demo / self-check ----------------------------------------
if __name__ == "__main__":
    B, L, C, feature_dim, num_classes = 2, 16, 32, 32, 10

    key = jax.random.PRNGKey(0)
    ks = jax.random.split(key, 10)

    # Synthetic frozen-backbone outputs.
    image_embeds = jax.random.normal(ks[0], (B, C, L), jnp.float32)       # (N, 32, L)
    cls_token = jax.random.normal(ks[1], (B, feature_dim), jnp.float32)   # pooler_output

    # Module parameters.
    conv_w = 0.1 * jax.random.normal(ks[2], (1, C, 3), jnp.float32)       # Conv1d(32,1,3,1,1)
    conv_b = 0.1 * jax.random.normal(ks[3], (1,), jnp.float32)
    w1 = 0.05 * jax.random.normal(ks[4], (feature_dim, 150), jnp.float32)
    b1 = 0.05 * jax.random.normal(ks[5], (1, 150), jnp.float32)
    w2 = 0.05 * jax.random.normal(ks[6], (150, 50), jnp.float32)
    b2 = 0.05 * jax.random.normal(ks[7], (1, 50), jnp.float32)
    w3 = 0.05 * jax.random.normal(ks[8], (50, num_classes), jnp.float32)
    b3 = 0.05 * jax.random.normal(ks[9], (1, num_classes), jnp.float32)
    head_params = (w1, b1, w2, b2, w3, b3)

    fwd = jax.jit(convnext_cls_head_forward, static_argnames=("compute_pooled",))

    # Default path: exactly what ConvNeXtClsHead.forward returns (logits only).
    logits = fwd(cls_token, head_params)
    jax.block_until_ready(logits)

    # Fused path that also materializes the (otherwise discarded) pooled_features branch.
    logits_fused, pooled = fwd(cls_token, head_params, image_embeds, (conv_w, conv_b),
                               compute_pooled=True)
    jax.block_until_ready((logits_fused, pooled))

    # Pure-JAX reference.
    def ref_forward(cls_tok, params, x_img, cw, cbias):
        rw1, rb1, rw2, rb2, rw3, rb3 = params
        h = cls_tok.reshape(cls_tok.shape[0], -1) @ rw1 + rb1
        h = jnp.where(h > 0, h, NEG_SLOPE * h)
        h = h @ rw2 + rb2
        h = jnp.where(h > 0, h, NEG_SLOPE * h)
        logits_r = h @ rw3 + rb3
        xp = jnp.pad(x_img, ((0, 0), (0, 0), (1, 1)))
        pooled_r = sum(jnp.einsum("bcl,c->bl", xp[:, :, k:k + x_img.shape[2]], cw[0, :, k])
                       for k in range(3)) + cbias[0]
        return logits_r, pooled_r

    logits_ref, pooled_ref = ref_forward(cls_token, head_params, image_embeds, conv_w, conv_b)

    assert logits.shape == (B, num_classes)
    assert logits_fused.shape == (B, num_classes)
    assert pooled.shape == (B, L)
    np.testing.assert_allclose(np.asarray(logits), np.asarray(logits_ref), atol=5e-2, rtol=5e-2)
    np.testing.assert_allclose(np.asarray(logits_fused), np.asarray(logits_ref), atol=5e-2, rtol=5e-2)
    np.testing.assert_allclose(np.asarray(pooled), np.asarray(pooled_ref), atol=5e-2, rtol=5e-2)
    print("KERNEL_OK")
</pallas_src>

<mosaic_0001>
module attributes {stable_mosaic.version = 11 : i64} {
  func.func @_mlp_kernel(%arg0: memref<2x32xf32, #tpu.memory_space<vmem>>, %arg1: memref<32x150xbf16, #tpu.memory_space<vmem>>, %arg2: memref<1x150xf32, #tpu.memory_space<vmem>>, %arg3: memref<150x50xbf16, #tpu.memory_space<vmem>>, %arg4: memref<1x50xf32, #tpu.memory_space<vmem>>, %arg5: memref<50x128xbf16, #tpu.memory_space<vmem>>, %arg6: memref<1x128xf32, #tpu.memory_space<vmem>>, %arg7: memref<2x128xf32, #tpu.memory_space<vmem>>) attributes {dimension_semantics = [], scalar_prefetch = 0 : i64, scratch_operands = 0 : i64, tpu.core_type = #tpu.core_type<tc>} {
    %c0 = arith.constant 0 : index
    %c0_0 = arith.constant 0 : index
    %0 = vector.load %arg0[%c0, %c0_0] : memref<2x32xf32, #tpu.memory_space<vmem>>, vector<2x32xf32>
    %1 = arith.truncf %0 : vector<2x32xf32> to vector<2x32xbf16>
    %c0_1 = arith.constant 0 : index
    %c0_2 = arith.constant 0 : index
    %2 = vector.load %arg1[%c0_1, %c0_2] : memref<32x150xbf16, #tpu.memory_space<vmem>>, vector<32x150xbf16>
    %cst = arith.constant dense<0.000000e+00> : vector<2x150xf32>
    %3 = tpu.matmul %1, %2, %cst {dimension_numbers = #tpu.dot_dimension_numbers<[1], [0], [0], [1], [0, 0, 1, 1], [], []>} : vector<2x32xbf16>, vector<32x150xbf16>, vector<2x150xf32> -> vector<2x150xf32>
    %c0_3 = arith.constant 0 : index
    %c0_4 = arith.constant 0 : index
    %4 = vector.load %arg2[%c0_3, %c0_4] : memref<1x150xf32, #tpu.memory_space<vmem>>, vector<1x150xf32>
    %5 = vector.broadcast %4 : vector<1x150xf32> to vector<2x150xf32>
    %6 = arith.addf %3, %5 : vector<2x150xf32>
    %cst_5 = arith.constant 0.000000e+00 : f32
    %7 = vector.broadcast %cst_5 : f32 to vector<2x150xf32>
    %8 = arith.cmpf ogt, %6, %7 : vector<2x150xf32>
    %cst_6 = arith.constant 0.00999999977 : f32
    %9 = vector.broadcast %cst_6 : f32 to vector<2x150xf32>
    %10 = arith.mulf %9, %6 : vector<2x150xf32>
    %11 = arith.select %8, %6, %10 : vector<2x150xi1>, vector<2x150xf32>
    %12 = arith.truncf %11 : vector<2x150xf32> to vector<2x150xbf16>
    %c0_7 = arith.constant 0 : index
    %c0_8 = arith.constant 0 : index
    %13 = vector.load %arg3[%c0_7, %c0_8] : memref<150x50xbf16, #tpu.memory_space<vmem>>, vector<150x50xbf16>
    %cst_9 = arith.constant dense<0.000000e+00> : vector<2x50xf32>
    %14 = tpu.matmul %12, %13, %cst_9 {dimension_numbers = #tpu.dot_dimension_numbers<[1], [0], [0], [1], [0, 0, 1, 1], [], []>} : vector<2x150xbf16>, vector<150x50xbf16>, vector<2x50xf32> -> vector<2x50xf32>
    %c0_10 = arith.constant 0 : index
    %c0_11 = arith.constant 0 : index
    %15 = vector.load %arg4[%c0_10, %c0_11] : memref<1x50xf32, #tpu.memory_space<vmem>>, vector<1x50xf32>
    %16 = vector.broadcast %15 : vector<1x50xf32> to vector<2x50xf32>
    %17 = arith.addf %14, %16 : vector<2x50xf32>
    %cst_12 = arith.constant 0.000000e+00 : f32
    %18 = vector.broadcast %cst_12 : f32 to vector<2x50xf32>
    %19 = arith.cmpf ogt, %17, %18 : vector<2x50xf32>
    %cst_13 = arith.constant 0.00999999977 : f32
    %20 = vector.broadcast %cst_13 : f32 to vector<2x50xf32>
    %21 = arith.mulf %20, %17 : vector<2x50xf32>
    %22 = arith.select %19, %17, %21 : vector<2x50xi1>, vector<2x50xf32>
    %23 = arith.truncf %22 : vector<2x50xf32> to vector<2x50xbf16>
    %c0_14 = arith.constant 0 : index
    %c0_15 = arith.constant 0 : index
    %24 = vector.load %arg5[%c0_14, %c0_15] : memref<50x128xbf16, #tpu.memory_space<vmem>>, vector<50x128xbf16>
    %cst_16 = arith.constant dense<0.000000e+00> : vector<2x128xf32>
    %25 = tpu.matmul %23, %24, %cst_16 {dimension_numbers = #tpu.dot_dimension_numbers<[1], [0], [0], [1], [0, 0, 1, 1], [], []>} : vector<2x50xbf16>, vector<50x128xbf16>, vector<2x128xf32> -> vector<2x128xf32>
    %c0_17 = arith.constant 0 : index
    %c0_18 = arith.constant 0 : index
    %26 = vector.load %arg6[%c0_17, %c0_18] : memref<1x128xf32, #tpu.memory_space<vmem>>, vector<1x128xf32>
    %27 = vector.broadcast %26 : vector<1x128xf32> to vector<2x128xf32>
    %28 = arith.addf %25, %27 : vector<2x128xf32>
    %c0_19 = arith.constant 0 : index
    %c0_20 = arith.constant 0 : index
    %29 = vector.load %arg7[%c0_19, %c0_20] : memref<2x128xf32, #tpu.memory_space<vmem>>, vector<2x128xf32>
    tpu.vector_store %arg7[%c0_19, %c0_20], %28 {strides = array<i32>} : memref<2x128xf32, #tpu.memory_space<vmem>>, vector<2x128xf32>,
    return
  }
}

</mosaic_0001>

<llo_original>
// kernel: convnext_cls_head_forward.1
$region0: #{convnext_cls_head_forward.1}
  #allocation0 [shape = 'u32[]', space=smem, size = 0x4, offset = 0x4, fixed_abs, tag = 'smem constant byte address 0x4 - core index']
  #allocation1 [shape = 'u32[72,128]{1,0:T(1,128)}', space=vmem, size = 0x9000, scoped, tag = 'internal scratch']
  %s0 = inlined_call_operand.vmem [shape: f32[2,32], index: 0, kind: input, shape index: {}]
  %s1 = inlined_call_operand.vmem [shape: bf16[32,150], index: 1, kind: input, shape index: {}]
  %s2 = inlined_call_operand.vmem [shape: f32[1,150], index: 2, kind: input, shape index: {}]
  %s3 = inlined_call_operand.vmem [shape: bf16[150,50], index: 3, kind: input, shape index: {}]
  %s4 = inlined_call_operand.vmem [shape: f32[1,50], index: 4, kind: input, shape index: {}]
  %s5 = inlined_call_operand.vmem [shape: bf16[50,128], index: 5, kind: input, shape index: {}]
  %s6 = inlined_call_operand.vmem [shape: f32[1,128], index: 6, kind: input, shape index: {}]
  %s7 = inlined_call_operand.hbm [shape: f32[2,128], index: 7, kind: output, shape index: {}]
  %s8 = sld [smem:[#allocation0]]
  $region38: #{convnext_cls_head_forward.1} parent=0
    _
  %s10 = ssub.s32 1, %s8
  %s11 = scalar_select 0, %s10, %s8
  $region1: #{convnext_cls_head_forward.1} parent=0
    #allocation2 [shape = 'u8[1024]{0}', space=vmem, size = 0x400, scoped, tag = 'output window, operand 0, single buffered']
    #allocation3 [shape = 's32[1]{0}', space=sflag, size = 0x4, scoped, tag = 'scoped memory for convnext_cls_head_forward.1']
    %12 = vsyncpa [#allocation3], 0
    // Predicated region
    $region2: #{convnext_cls_head_forward.1} parent=1 // pred_check
      _
    $region3: #{convnext_cls_head_forward.1} parent=1 // pred_check_branch
      %14 = sbr.rel (0) target = $region5
    $region4: #{convnext_cls_head_forward.1} parent=1 // pred_region
      _
    $region5: #{convnext_cls_head_forward.1} parent=1 // pred_fallthru
      _
    // Predicated region
    $region6: #{convnext_cls_head_forward.1} parent=1 // pred_check
      _
    $region7: #{convnext_cls_head_forward.1} parent=1 // pred_check_branch
      %16 = sbr.rel (0) target = $region9
    $region8: #{convnext_cls_head_forward.1} parent=1 // pred_region
      _
    $region9: #{convnext_cls_head_forward.1} parent=1 // pred_fallthru
      _
    // Predicated region
    $region10: #{convnext_cls_head_forward.1} parent=1 // pred_check
      _
    $region11: #{convnext_cls_head_forward.1} parent=1 // pred_check_branch
      %18 = sbr.rel (0) target = $region13
    $region12: #{convnext_cls_head_forward.1} parent=1 // pred_region
      _
    $region13: #{convnext_cls_head_forward.1} parent=1 // pred_fallthru
      _
    // Predicated region
    $region14: #{convnext_cls_head_forward.1} parent=1 // pred_check
      _
    $region15: #{convnext_cls_head_forward.1} parent=1 // pred_check_branch
      %20 = sbr.rel (0) target = $region17
    $region16: #{convnext_cls_head_forward.1} parent=1 // pred_region
      _
    $region17: #{convnext_cls_head_forward.1} parent=1 // pred_fallthru
      _
    // Predicated region
    $region18: #{convnext_cls_head_forward.1} parent=1 // pred_check
      _
    $region19: #{convnext_cls_head_forward.1} parent=1 // pred_check_branch
      %22 = sbr.rel (0) target = $region21
    $region20: #{convnext_cls_head_forward.1} parent=1 // pred_region
      _
    $region21: #{convnext_cls_head_forward.1} parent=1 // pred_fallthru
      _
    // Predicated region
    $region22: #{convnext_cls_head_forward.1} parent=1 // pred_check
      _
    $region23: #{convnext_cls_head_forward.1} parent=1 // pred_check_branch
      %24 = sbr.rel (0) target = $region25
    $region24: #{convnext_cls_head_forward.1} parent=1 // pred_region
      _
    $region25: #{convnext_cls_head_forward.1} parent=1 // pred_fallthru
      _
    // Predicated region
    $region26: #{convnext_cls_head_forward.1} parent=1 // pred_check
      _
    $region27: #{convnext_cls_head_forward.1} parent=1 // pred_check_branch
      %26 = sbr.rel (0) target = $region29
    $region28: #{convnext_cls_head_forward.1} parent=1 // pred_region
      _
    $region29: #{convnext_cls_head_forward.1} parent=1 // pred_fallthru
      _
    %v28 = vld [vmem:[%s0] sm:$0x3]
    %v29 = vpack.c.bf16 %v28, %v28
    %v30 = vld [vmem:[%s1] sm:$0xff]
    %v31 = vld [vmem:[%s1 + $0x8] sm:$0xff]
    %v32 = vld [vmem:[%s1 + $0x10] sm:$0xff]
    %v33 = vld [vmem:[%s1 + $0x18] sm:$0xff]
    %v34 = vld [vmem:[%s2] sm:$0x3]
    %v36 = vperm.slane %v34, 0
    %v37 = vperm.slane %v34, 1
    %v44 = vunpack.c.l.b16 %v30
    %v45 = vunpack.c.h.b16 %v30
    %v46 = vunpack.c.l.b16 %v31
    %v47 = vunpack.c.h.b16 %v31
    %v48 = vunpack.c.l.b16 %v32
    %v49 = vunpack.c.h.b16 %v32
    %v50 = vunpack.c.l.b16 %v33
    %v51 = vunpack.c.h.b16 %v33
    %v52 = vpack.c.b16 %v46, %v44
    %v53 = vpack.c.b16 %v47, %v45
    %v54 = vpack.c.b16 %v50, %v48
    %v55 = vpack.c.b16 %v51, %v49
    %vm60 = vcmask 261120
    %v62 = vsel %vm60, %v29, 0
    %64 = vmatpush.bf16.msra.mxu0 0
    %65 = vmatpush.bf16.msra.mxu0 0
    %66 = vmatpush.bf16.msra.mxu0 0
    %67 = vmatpush.bf16.msra.mxu0 0
    %68 = vmatpush.bf16.msra.mxu0 0
    %69 = vmatpush.bf16.msra.mxu0 0
    %70 = vmatpush.bf16.msra.mxu0 %v54
    %71 = vmatpush.bf16.msra.mxu0 %v52
    %72 = vmatmul.bf16.gmra.mxu0 %v62
    %v73 = vpop.f32.mrf.mxu0
    %v74 = vadd.f32 %v36, %v73
    %v75 = vpop.f32.mrf.mxu0
    %76 = vdwg.mxu0
    %77 = vmatpush.bf16.msra.mxu0 0
    %78 = vmatpush.bf16.msra.mxu0 0
    %79 = vmatpush.bf16.msra.mxu0 0
    %80 = vmatpush.bf16.msra.mxu0 0
    %81 = vmatpush.bf16.msra.mxu0 0
    %82 = vmatpush.bf16.msra.mxu0 0
    %83 = vmatpush.bf16.msra.mxu0 %v55
    %84 = vmatpush.bf16.msra.mxu0 %v53
    %85 = vmatmul.bf16.gmra.mxu0 %v62
    %v86 = vpop.f32.mrf.mxu0
    %v87 = vadd.f32 %v37, %v86
    %v88 = vpop.f32.mrf.mxu0
    %89 = vdwg.mxu0
    %vm90 = vcmp.gt.f32.partialorder %v74, 0.0
    %vm91 = vcmp.gt.f32.partialorder %v87, 0.0
    %v92 = vmul.f32 %v74, 0.01
    %v93 = vmul.f32 %v87, 0.01
    %v94 = vsel %vm90, %v74, %v92
    %v95 = vsel %vm91, %v87, %v93
    %v96 = vpack.c.bf16 %v94, %v94
    %v97 = vpack.c.bf16 %v95, %v95
    %v98 = vld [vmem:[%s3] sm:$0xf]
    %v99 = vld [vmem:[%s3 + $0x4] sm:$0xf]
    %v100 = vld [vmem:[%s3 + $0x8] sm:$0xf]
    %v101 = vld [vmem:[%s3 + $0xc] sm:$0xf]
    %v102 = vld [vmem:[%s3 + $0x10] sm:$0xf]
    %v103 = vld [vmem:[%s3 + $0x14] sm:$0xf]
    %v104 = vld [vmem:[%s3 + $0x18] sm:$0xf]
    %v105 = vld [vmem:[%s3 + $0x1c] sm:$0xf]
    %v106 = vld [vmem:[%s3 + $0x20] sm:$0xf]
    %v107 = vld [vmem:[%s3 + $0x24] sm:$0xf]
    %v108 = vld [vmem:[%s3 + $0x28] sm:$0xf]
    %v109 = vld [vmem:[%s3 + $0x2c] sm:$0xf]
    %v110 = vld [vmem:[%s3 + $0x30] sm:$0xf]
    %v111 = vld [vmem:[%s3 + $0x34] sm:$0xf]
    %v112 = vld [vmem:[%s3 + $0x38] sm:$0xf]
    %v113 = vld [vmem:[%s3 + $0x3c] sm:$0xf]
    %v114 = vld [vmem:[%s3 + $0x40] sm:$0xf]
    %v115 = vld [vmem:[%s3 + $0x44] sm:$0xf]
    %v116 = vld [vmem:[%s3 + $0x48] sm:$0x7]
    %v117 = vld [vmem:[%s4] sm:$0x1]
    %v119 = vperm.slane %v117, 0
    %v140 = vunpack.c.l.b16 %v98
    %v141 = vunpack.c.l.b16 %v99
    %v142 = vunpack.c.l.b16 %v100
    %v143 = vunpack.c.l.b16 %v101
    %v144 = vunpack.c.l.b16 %v102
    %v145 = vunpack.c.l.b16 %v103
    %v146 = vunpack.c.l.b16 %v104
    %v147 = vunpack.c.l.b16 %v105
    %v148 = vunpack.c.l.b16 %v106
    %v149 = vunpack.c.l.b16 %v107
    %v150 = vunpack.c.l.b16 %v108
    %v151 = vunpack.c.l.b16 %v109
    %v152 = vunpack.c.l.b16 %v110
    %v153 = vunpack.c.l.b16 %v111
    %v154 = vunpack.c.l.b16 %v112
    %v155 = vunpack.c.l.b16 %v113
    %v156 = vunpack.c.l.b16 %v114
    %v157 = vunpack.c.l.b16 %v115
    %v158 = vunpack.c.l.b16 %v116
    %v159 = vpack.c.b16 %v141, %v140
    %v160 = vpack.c.b16 %v143, %v142
    %v161 = vpack.c.b16 %v145, %v144
    %v162 = vpack.c.b16 %v147, %v146
    %v163 = vpack.c.b16 %v149, %v148
    %v164 = vpack.c.b16 %v151, %v150
    %v165 = vpack.c.b16 %v153, %v152
    %v166 = vpack.c.b16 %v155, %v154
    %v167 = vpack.c.b16 %v157, %v156
    %v168 = vpack.c.b16 %v158, %v158
    %vm178 = vcmask 179200
    %v180 = vsel %vm178, %v97, 0
    %vm182 = vcmask 1042432
    %v184 = vsel %vm182, %v168, 0
    %186 = vmatpush.bf16.msra.mxu0 %v166
    %187 = vmatpush.bf16.msra.mxu0 %v165
    %188 = vmatpush.bf16.msra.mxu0 %v164
    %189 = vmatpush.bf16.msra.mxu0 %v163
    %190 = vmatpush.bf16.msra.mxu0 %v162
    %191 = vmatpush.bf16.msra.mxu0 %v161
    %192 = vmatpush.bf16.msra.mxu0 %v160
    %193 = vmatpush.bf16.msra.mxu0 %v159
    %194 = vmatmul.bf16.gmra.mxu0 %v96
    %v195 = vpop.f32.mrf.mxu0
    %v196 = vadd.f32 %v119, %v195
    %v197 = vpop.f32.mrf.mxu0
    %198 = vdwg.mxu0
    %199 = vmatpush.bf16.msra.mxu0 0
    %200 = vmatpush.bf16.msra.mxu0 0
    %201 = vmatpush.bf16.msra.mxu0 0
    %202 = vmatpush.bf16.msra.mxu0 0
    %203 = vmatpush.bf16.msra.mxu0 0
    %204 = vmatpush.bf16.msra.mxu0 0
    %205 = vmatpush.bf16.msra.mxu0 %v184
    %206 = vmatpush.bf16.msra.mxu0 %v167
    %207 = vmatmul.bf16.gmra.mxu0 %v180
    %v208 = vpop.f32.mrf.mxu0
    %v209 = vadd.f32 %v196, %v208
    %v210 = vpop.f32.mrf.mxu0
    %211 = vdwg.mxu0
    %vm212 = vcmp.gt.f32.partialorder %v209, 0.0
    %v213 = vmul.f32 %v209, 0.01
    %v214 = vsel %vm212, %v209, %v213
    %v215 = vpack.c.bf16 %v214, %v214
    %v216 = vld [vmem:[%s5] sm:$0xf]
    %v217 = vld [vmem:[%s5 + $0x4] sm:$0xf]
    %v218 = vld [vmem:[%s5 + $0x8] sm:$0xf]
    %v219 = vld [vmem:[%s5 + $0xc] sm:$0xf]
    %v220 = vld [vmem:[%s5 + $0x10] sm:$0xf]
    %v221 = vld [vmem:[%s5 + $0x14] sm:$0xf]
    %v222 = vld [vmem:[%s5 + $0x18] sm:$0x1]
    %v223 = vld [vmem:[%s6] sm:$0x1]
    %v225 = vperm.slane %v223, 0
    %v234 = vunpack.c.l.b16 %v216
    %v235 = vunpack.c.l.b16 %v217
    %v236 = vunpack.c.l.b16 %v218
    %v237 = vunpack.c.l.b16 %v219
    %v238 = vunpack.c.l.b16 %v220
    %v239 = vunpack.c.l.b16 %v221
    %v240 = vunpack.c.l.b16 %v222
    %v241 = vpack.c.b16 %v235, %v234
    %v242 = vpack.c.b16 %v237, %v236
    %v243 = vpack.c.b16 %v239, %v238
    %v244 = vpack.c.b16 %v240, %v240
    %vm248 = vcmask 408576
    %v250 = vsel %vm248, %v215, 0
    %vm252 = vcmask 1040384
    %v254 = vsel %vm252, %v244, 0
    %256 = vmatpush.bf16.msra.mxu0 0
    %257 = vmatpush.bf16.msra.mxu0 0
    %258 = vmatpush.bf16.msra.mxu0 0
    %259 = vmatpush.bf16.msra.mxu0 0
    %260 = vmatpush.bf16.msra.mxu0 %v254
    %261 = vmatpush.bf16.msra.mxu0 %v243
    %262 = vmatpush.bf16.msra.mxu0 %v242
    %263 = vmatpush.bf16.msra.mxu0 %v241
    %264 = vmatmul.bf16.gmra.mxu0 %v250
    %v265 = vpop.f32.mrf.mxu0
    %v266 = vadd.f32 %v225, %v265
    %v267 = vpop.f32.mrf.mxu0
    %268 = vdwg.mxu0
    %269 = vst [vmem:[#allocation2] sm:$0x3] %v266
    // Predicated region
    $region30: #{convnext_cls_head_forward.1} parent=1 // pred_check
      _
    $region31: #{convnext_cls_head_forward.1} parent=1 // pred_check_branch
      %271 = sbr.rel (0) target = $region33
    $region32: #{convnext_cls_head_forward.1} parent=1 // pred_region
      %273 = vsyncadd [#allocation3], 0
      %s275 = sshll.u32 [#allocation2], 4
      %s276 = int_to_ptr.vmem [resolvable:$true] %s275
      %s277 = sshll.u32 %s7, 4
      %s278 = int_to_ptr.hbm [resolvable:$true] %s277
      %280 = dma.vmem_to_hbm [thread:$0]  %s276, 32, %s278, [#allocation3]
    $region33: #{convnext_cls_head_forward.1} parent=1 // pred_fallthru
      _
    // Predicated region
    $region34: #{convnext_cls_head_forward.1} parent=1 // pred_check
      _
    $region35: #{convnext_cls_head_forward.1} parent=1 // pred_check_branch
      %282 = sbr.rel (0) target = $region37
    $region36: #{convnext_cls_head_forward.1} parent=1 // pred_region
      %284 = dma.done [#allocation3], 32
    $region37: #{convnext_cls_head_forward.1} parent=1 // pred_fallthru
      _
    %285 = vsyncpa [#allocation3], 1

</llo_original>
